<compile_context>
chip_gen: v7x
topology: tpu7x:2x2x1
jax: 0.10.0
libtpu: 0.0.40
codegen_flags: <defaults>
</compile_context>

<pallas_src>
import math

import jax
import jax.numpy as jnp
from jax import lax
from jax.experimental import pallas as pl
from jax.experimental.pallas import tpu as pltpu

_BN_EPS = 1e-5
_LANE = 128
_SUBLANE = 8
_TM_MAX = 4096                      # max lane-tile width of the (C, M) outputs


def _round_up(x, n):
    return ((x + n - 1) // n) * n


def _pick_tm(m):
    """Lane tile (multiple of 128, <= _TM_MAX) that minimizes last-tile padding."""
    m128 = _round_up(max(m, 1), _LANE)
    if m128 <= _TM_MAX:
        return m128
    n_tiles = -(-m // _TM_MAX)
    return _round_up(-(-m // n_tiles), _LANE)


def _vmem_limit_bytes():
    """Per-generation scoped-VMEM budget: ~96 MiB on v5e/v6e (128 MiB physical),
    ~48 MiB on v7x (64 MiB physical), 48 MiB fallback if query unavailable."""
    cap = 64 * 1024 * 1024
    try:
        cap = int(pltpu.get_tpu_info().vmem_capacity_bytes)
    except Exception:
        pass
    return int(max(32 * 1024 * 1024,
                   min(cap - 16 * 1024 * 1024, 96 * 1024 * 1024)))


_VMEM_LIMIT_BYTES = _vmem_limit_bytes()


# ------------------------------ Pallas kernels ------------------------------

def _conv_relu_kernel(x_ref, w_ref, o_ref):
    """o = relu(w @ x); bias folded into w via the ones row of x.
    w:(C,K) bf16, x:(K,TM) bf16, o:(C,TM) bf16/f32."""
    y = jnp.dot(w_ref[...], x_ref[...], preferred_element_type=jnp.float32)
    o_ref[...] = jnp.maximum(y, 0.0).astype(o_ref.dtype)


def _make_conv_bn_relu_fused_kernel(m_valid, tm):
    """Single-call conv -> BatchNorm(batch stats) -> ReLU.
    Grid (2, m_tiles), pass axis outermost.  Pass 0: conv + stats, y kept
    resident in a bf16 VMEM scratch.  Pass boundary: fold stats+affine into
    scale/shift.  Pass 1: lane-dense affine + ReLU to the output."""
    inv_m = 1.0 / float(m_valid)

    def kernel(x_ref, w_ref, gamma_ref, beta_ref, o_ref,
               ybuf, sum_ref, ssq_ref, scale_ref, shift_ref):
        p = pl.program_id(0)           # 0 = conv+stats, 1 = affine+relu
        j = pl.program_id(1)           # M tile
        start = pl.multiple_of(j * tm, _LANE)

        @pl.when((p == 0) & (j == 0))
        def _():
            sum_ref[...] = jnp.zeros_like(sum_ref)
            ssq_ref[...] = jnp.zeros_like(ssq_ref)

        @pl.when(p == 0)
        def _():
            y = jnp.dot(w_ref[...], x_ref[...],
                        preferred_element_type=jnp.float32)
            # Padded M columns are all-zero (incl. the ones row) -> contribute 0.
            sum_ref[...] += jnp.sum(y, axis=1, keepdims=True)
            ssq_ref[...] += jnp.sum(y * y, axis=1, keepdims=True)
            ybuf[:, pl.ds(start, tm)] = y.astype(ybuf.dtype)

        @pl.when((p == 1) & (j == 0))
        def _():
            mean = sum_ref[...] * inv_m
            var = jnp.maximum(ssq_ref[...] * inv_m - mean * mean, 0.0)
            scale = gamma_ref[...] * lax.rsqrt(var + _BN_EPS)
            scale_ref[...] = scale
            shift_ref[...] = beta_ref[...] - mean * scale

        @pl.when(p == 1)
        def _():
            yv = ybuf[:, pl.ds(start, tm)].astype(jnp.float32)
            o_ref[...] = jnp.maximum(
                yv * scale_ref[...] + shift_ref[...], 0.0).astype(o_ref.dtype)

    return kernel


def _conv_stats_kernel(x_ref, w_ref, y_ref, sum_ref, ssq_ref):
    """Fallback phase 1: conv (+bias via ones row) + per-channel sum/ssq."""
    @pl.when(pl.program_id(0) == 0)
    def _():
        sum_ref[...] = jnp.zeros_like(sum_ref)
        ssq_ref[...] = jnp.zeros_like(ssq_ref)

    y = jnp.dot(w_ref[...], x_ref[...], preferred_element_type=jnp.float32)
    sum_ref[...] += jnp.sum(y, axis=1, keepdims=True)
    ssq_ref[...] += jnp.sum(y * y, axis=1, keepdims=True)
    y_ref[...] = y.astype(y_ref.dtype)


def _affine_relu_kernel(y_ref, scale_ref, shift_ref, o_ref):
    """Fallback phase 2: o = relu(y * scale + shift), math in f32."""
    yv = y_ref[...].astype(jnp.float32)
    o_ref[...] = jnp.maximum(
        yv * scale_ref[...] + shift_ref[...], 0.0).astype(o_ref.dtype)


# ---------------------------- pallas_call wrappers ---------------------------

def _conv_relu_call(patches, w_mat, tm, out_dtype):
    k_pad, m_pad = patches.shape
    c_pad = w_mat.shape[0]
    ob = jnp.dtype(out_dtype).itemsize
    cost = pl.CostEstimate(
        flops=2 * m_pad * k_pad * c_pad, transcendentals=0,
        bytes_accessed=patches.size * 2 + w_mat.size * 2 + c_pad * m_pad * ob)
    return pl.pallas_call(
        _conv_relu_kernel,
        out_shape=jax.ShapeDtypeStruct((c_pad, m_pad), out_dtype),
        grid_spec=pltpu.PrefetchScalarGridSpec(
            num_scalar_prefetch=0,
            grid=(m_pad // tm,),
            in_specs=[
                pl.BlockSpec((k_pad, tm), lambda i: (0, i)),
                pl.BlockSpec((c_pad, k_pad), lambda i: (0, 0)),
            ],
            out_specs=pl.BlockSpec((c_pad, tm), lambda i: (0, i)),
        ),
        compiler_params=pltpu.CompilerParams(
            dimension_semantics=("parallel",),
            vmem_limit_bytes=_VMEM_LIMIT_BYTES),
        cost_estimate=cost,
    )(patches, w_mat)


def _conv_bn_relu_fused_call(patches, w_mat, gamma, beta, tm, m_valid, out_dtype):
    k_pad, m_pad = patches.shape
    c_pad = w_mat.shape[0]
    nt = m_pad // tm
    ob = jnp.dtype(out_dtype).itemsize
    cost = pl.CostEstimate(
        flops=2 * m_pad * k_pad * c_pad + 7 * m_pad * c_pad,
        transcendentals=c_pad,
        bytes_accessed=patches.size * 2 + w_mat.size * 2 + 2 * c_pad * 4
        + c_pad * m_pad * ob)
    return pl.pallas_call(
        _make_conv_bn_relu_fused_kernel(m_valid, tm),
        out_shape=jax.ShapeDtypeStruct((c_pad, m_pad), out_dtype),
        grid_spec=pltpu.PrefetchScalarGridSpec(
            num_scalar_prefetch=0,
            grid=(2, nt),
            in_specs=[
                # During pass 1 the patch index pins to tile 0 (one extra DMA,
                # then skipped since the block index no longer changes).
                pl.BlockSpec((k_pad, tm), lambda p, j: (0, j * (1 - p))),
                pl.BlockSpec((c_pad, k_pad), lambda p, j: (0, 0)),
                pl.BlockSpec((c_pad, 1), lambda p, j: (0, 0)),
                pl.BlockSpec((c_pad, 1), lambda p, j: (0, 0)),
            ],
            # During pass 0 the output pins to block 0 (written only in pass 1).
            out_specs=pl.BlockSpec((c_pad, tm), lambda p, j: (0, j * p)),
            scratch_shapes=[
                pltpu.VMEM((c_pad, m_pad), jnp.bfloat16),   # resident y
                pltpu.VMEM((c_pad, 1), jnp.float32),        # sum
                pltpu.VMEM((c_pad, 1), jnp.float32),        # sum of squares
                pltpu.VMEM((c_pad, 1), jnp.float32),        # scale
                pltpu.VMEM((c_pad, 1), jnp.float32),        # shift
            ],
        ),
        compiler_params=pltpu.CompilerParams(
            dimension_semantics=("arbitrary", "arbitrary"),
            vmem_limit_bytes=_VMEM_LIMIT_BYTES),
        cost_estimate=cost,
    )(patches, w_mat, gamma, beta)


def _conv_stats_call(patches, w_mat, tm):
    k_pad, m_pad = patches.shape
    c_pad = w_mat.shape[0]
    cost = pl.CostEstimate(
        flops=2 * m_pad * k_pad * c_pad + 4 * m_pad * c_pad,
        transcendentals=0,
        bytes_accessed=patches.size * 2 + w_mat.size * 2
        + c_pad * m_pad * 2 + 2 * c_pad * 4)
    return pl.pallas_call(
        _conv_stats_kernel,
        out_shape=(
            jax.ShapeDtypeStruct((c_pad, m_pad), jnp.bfloat16),
            jax.ShapeDtypeStruct((c_pad, 1), jnp.float32),
            jax.ShapeDtypeStruct((c_pad, 1), jnp.float32),
        ),
        grid_spec=pltpu.PrefetchScalarGridSpec(
            num_scalar_prefetch=0,
            grid=(m_pad // tm,),
            in_specs=[
                pl.BlockSpec((k_pad, tm), lambda i: (0, i)),
                pl.BlockSpec((c_pad, k_pad), lambda i: (0, 0)),
            ],
            out_specs=[
                pl.BlockSpec((c_pad, tm), lambda i: (0, i)),
                pl.BlockSpec((c_pad, 1), lambda i: (0, 0)),
                pl.BlockSpec((c_pad, 1), lambda i: (0, 0)),
            ],
        ),
        compiler_params=pltpu.CompilerParams(
            dimension_semantics=("arbitrary",),   # stats accumulate across M tiles
            vmem_limit_bytes=_VMEM_LIMIT_BYTES),
        cost_estimate=cost,
    )(patches, w_mat)


def _affine_relu_call(y, scale, shift, tm, out_dtype):
    c_pad, m_pad = y.shape
    ob = jnp.dtype(out_dtype).itemsize
    cost = pl.CostEstimate(
        flops=3 * c_pad * m_pad, transcendentals=0,
        bytes_accessed=c_pad * m_pad * 2 + c_pad * m_pad * ob + 2 * c_pad * 4)
    return pl.pallas_call(
        _affine_relu_kernel,
        out_shape=jax.ShapeDtypeStruct((c_pad, m_pad), out_dtype),
        grid_spec=pltpu.PrefetchScalarGridSpec(
            num_scalar_prefetch=0,
            grid=(m_pad // tm,),
            in_specs=[
                pl.BlockSpec((c_pad, tm), lambda i: (0, i)),
                pl.BlockSpec((c_pad, 1), lambda i: (0, 0)),
                pl.BlockSpec((c_pad, 1), lambda i: (0, 0)),
            ],
            out_specs=pl.BlockSpec((c_pad, tm), lambda i: (0, i)),
        ),
        compiler_params=pltpu.CompilerParams(
            dimension_semantics=("parallel",),
            vmem_limit_bytes=_VMEM_LIMIT_BYTES),
        cost_estimate=cost,
    )(y, scale, shift)


# --------------------------------- JAX glue ---------------------------------

def _conv_out_hw(h, w, k, stride, padding):
    return ((h + 2 * padding - k) // stride + 1,
            (w + 2 * padding - k) // stride + 1)


def _im2col_t(x_cnhw, k, stride, padding, k_pad, tm):
    """x:(C,N,H,W) -> bf16 patch matrix (k_pad, m_pad).  Rows ordered
    (di, dj, c_in) to match the weight layout, plus a trailing ones row for the
    folded bias; padded M columns are all-zero (exact BN stats for free).
    TODO(synk): fuse im2col into the conv kernel (halo-DMA spatial tiles +
    in-kernel tap loop) to cut the ~k^2 x activation HBM duplication."""
    c, n, h, w = x_cnhw.shape
    xp = jnp.pad(x_cnhw.astype(jnp.bfloat16),
                 ((0, 0), (0, 0), (padding, padding), (padding, padding)))
    hp, wp = h + 2 * padding, w + 2 * padding
    ho = (hp - k) // stride + 1
    wo = (wp - k) // stride + 1
    taps = []
    for di in range(k):
        for dj in range(k):
            taps.append(xp[:, :, di:di + (ho - 1) * stride + 1:stride,
                              dj:dj + (wo - 1) * stride + 1:stride])
    m = n * ho * wo
    m_pad = _round_up(m, tm)
    k_real = k * k * c
    pat = jnp.stack(taps, axis=0).reshape(k_real, m)
    ones = jnp.ones((1, m), jnp.bfloat16)                       # bias row
    pat = jnp.concatenate([pat, ones], axis=0)
    pat = jnp.pad(pat, ((0, k_pad - (k_real + 1)), (0, m_pad - m)))
    return pat, m, ho, wo


def _conv_params(key, in_c, out_c, k):
    """Deterministic init mimicking PyTorch Conv2d default (uniform +-1/sqrt(fan_in))."""
    fan_in = in_c * k * k
    bound = 1.0 / math.sqrt(fan_in)
    wkey, bkey = jax.random.split(key)
    w = jax.random.uniform(wkey, (out_c, in_c, k, k), jnp.float32, -bound, bound)
    b = jax.random.uniform(bkey, (out_c,), jnp.float32, -bound, bound)
    return w, b


def _prep_weight_bias(w_oihw, b, c_out_pad, k_pad):
    """PyTorch (O,I,kh,kw) + bias -> padded bf16 (C_out_pad, K_pad); contraction
    ordered (di, dj, c_in) with the bias appended as the last real K column."""
    o, i, kh, kw = w_oihw.shape
    w = jnp.transpose(w_oihw, (0, 2, 3, 1)).reshape(o, kh * kw * i)
    w = jnp.concatenate([w, b.reshape(o, 1)], axis=1)
    w = jnp.pad(w, ((0, c_out_pad - o), (0, k_pad - (kh * kw * i + 1))))
    return w.astype(jnp.bfloat16)


class DoubleConvPool1DPallas:
    """Pallas re-implementation of _DoubleConvPool1D.forward (lane-dense, tiled)."""

    def __init__(self, in_channels, padding, filter_size, kernel_size, stride,
                 pool_kernel, pool_stride, convolutions_post_pool, *, key):
        self.padding = padding
        self.kernel_size = kernel_size
        self.stride = stride
        self.pool_kernel = pool_kernel
        self.pool_stride = pool_stride
        self.convolutions_post_pool = convolutions_post_pool

        half = filter_size // 2
        self.c1 = half
        self.c2 = filter_size

        self.c1_pad = _round_up(half, _SUBLANE)
        self.c2_pad = _round_up(filter_size, _SUBLANE)
        # +1 for the folded-bias column; rounded to the bf16 sublane quantum.
        self.k1_pad = _round_up(kernel_size * kernel_size * in_channels + 1, 16)
        self.k2_pad = _round_up(kernel_size * kernel_size * half + 1, 16)
        self.k3_pad = _round_up(kernel_size * kernel_size * filter_size + 1, 16)

        n_keys = 2 + max(convolutions_post_pool - 1, 0)
        keys = jax.random.split(key, n_keys)

        w1, b1 = _conv_params(keys[0], in_channels, half, kernel_size)
        self.w1m = _prep_weight_bias(w1, b1, self.c1_pad, self.k1_pad)
        # BatchNorm2d(half) affine params, PyTorch default init (gamma=1, beta=0).
        self.gamma1 = jnp.pad(jnp.ones((half, 1), jnp.float32),
                              ((0, self.c1_pad - half), (0, 0)))
        self.beta1 = jnp.zeros((self.c1_pad, 1), jnp.float32)
        # TODO(synk): running_mean/running_var buffer updates are not modelled.

        wp, bp = _conv_params(keys[1], half, filter_size, kernel_size)
        self.wpm = _prep_weight_bias(wp, bp, self.c2_pad, self.k2_pad)

        self.extra = []
        for i in range(convolutions_post_pool - 1):
            we, be = _conv_params(keys[2 + i], filter_size, filter_size, kernel_size)
            self.extra.append(_prep_weight_bias(we, be, self.c2_pad, self.k3_pad))

        self._forward_jit = jax.jit(self._forward)

    # -------------------------- per-stage helpers --------------------------

    def _conv_relu(self, x_cnhw, w_mat, c_out, k_pad, out_dtype):
        _, n, h, w = x_cnhw.shape
        ho, wo = _conv_out_hw(h, w, self.kernel_size, self.stride, self.padding)
        m = n * ho * wo
        tm = _pick_tm(m)
        patches, m, ho, wo = _im2col_t(x_cnhw, self.kernel_size, self.stride,
                                       self.padding, k_pad, tm)
        y = _conv_relu_call(patches, w_mat, tm, out_dtype)
        return y[:c_out, :m].reshape(c_out, n, ho, wo)

    def _conv_bn_relu(self, x_cnhw, w_mat, gamma, beta, c_out, k_pad, out_dtype):
        _, n, h, w = x_cnhw.shape
        ho, wo = _conv_out_hw(h, w, self.kernel_size, self.stride, self.padding)
        m = n * ho * wo
        tm = _pick_tm(m)
        patches, m, ho, wo = _im2col_t(x_cnhw, self.kernel_size, self.stride,
                                       self.padding, k_pad, tm)
        k_p, m_pad = patches.shape
        c_pad = w_mat.shape[0]

        # VMEM footprint of the fused (y-resident) path: resident bf16 y +
        # double-buffered patch/out blocks + weights + margin.
        fused_bytes = (c_pad * m_pad * 2
                       + 2 * (k_p * tm * 2 + c_pad * tm * 2)
                       + c_pad * k_p * 2 + (1 << 20))

        if fused_bytes <= (_VMEM_LIMIT_BYTES * 3) // 4:
            # Single-call fusion: no (C, M) HBM round trip between phases.
            ybn = _conv_bn_relu_fused_call(patches, w_mat, gamma, beta,
                                           tm, m, out_dtype)
        else:
            # Fallback: two passes through HBM, y stored bf16; scale/shift
            # folded in XLA (tiny (C,1) math).
            y, s, ssq = _conv_stats_call(patches, w_mat, tm)
            mean = s / m
            var = jnp.maximum(ssq / m - mean * mean, 0.0)   # biased var (train)
            scale = gamma * lax.rsqrt(var + _BN_EPS)
            shift = beta - mean * scale
            ybn = _affine_relu_call(y, scale, shift, tm, out_dtype)

        return ybn[:c_out, :m].reshape(c_out, n, ho, wo)

    def _maxpool(self, x_cnhw):
        # TODO(synk): fuse the pool into the BN affine/ReLU kernel epilogue
        # (needs spatially-aware / halo tiling); here it is a fused strided
        # elementwise max in XLA on bf16 (no stacked HBM array).
        pk, ps = self.pool_kernel, self.pool_stride
        _, _, h, w = x_cnhw.shape
        ho = (h - pk) // ps + 1
        wo = (w - pk) // ps + 1
        out = None
        for di in range(pk):
            for dj in range(pk):
                v = x_cnhw[:, :, di:di + (ho - 1) * ps + 1:ps,
                              dj:dj + (wo - 1) * ps + 1:ps]
                out = v if out is None else jnp.maximum(out, v)
        return out

    # ------------------------------- forward -------------------------------

    def _forward(self, x_nchw):
        # Internal layout: channel-first (C, N, H, W); flattened N*H*W sits on
        # the lane axis of every Pallas kernel (lane-dense).  Intermediates are
        # bf16; the final stage emits f32.
        x = jnp.transpose(x_nchw.astype(jnp.bfloat16), (1, 0, 2, 3))

        # conv2d_1 -> BatchNorm2d (batch stats) -> ReLU (one fused Pallas call)
        x = self._conv_bn_relu(x, self.w1m, self.gamma1, self.beta1,
                               self.c1, self.k1_pad, jnp.bfloat16)
        # MaxPool2d
        x = self._maxpool(x)
        # conv_post_pool_first -> ReLU
        first_is_last = len(self.extra) == 0
        x = self._conv_relu(x, self.wpm, self.c2, self.k2_pad,
                            jnp.float32 if first_is_last else jnp.bfloat16)
        # conv2d_2[i] -> ReLU
        for idx, w_mat in enumerate(self.extra):
            out_dtype = jnp.float32 if idx == len(self.extra) - 1 else jnp.bfloat16
            x = self._conv_relu(x, w_mat, self.c2, self.k3_pad, out_dtype)

        return jnp.transpose(x, (1, 0, 2, 3))   # back to NCHW

    def __call__(self, x_nchw):
        return self._forward_jit(x_nchw)


if __name__ == "__main__":
    key = jax.random.PRNGKey(0)
    xkey, pkey = jax.random.split(key)

    # Small hyperparameters consistent with the module's forward pass.
    in_channels = 4
    padding = 1
    filter_size = 8          # conv1 outputs filter_size // 2 = 4 channels
    kernel_size = 3
    stride = 1
    pool_kernel = 2
    pool_stride = 2
    convolutions_post_pool = 2

    x = jax.random.normal(xkey, (2, in_channels, 16, 16), jnp.float32)  # NCHW

    module = DoubleConvPool1DPallas(
        in_channels, padding, filter_size, kernel_size, stride,
        pool_kernel, pool_stride, convolutions_post_pool, key=pkey)

    out = jax.block_until_ready(module(x))
    # conv(16->16) -> pool(16->8) -> conv(8->8) -> conv(8->8), filter_size channels.
    assert out.shape == (2, filter_size, 8, 8), out.shape
    assert out.dtype == jnp.float32, out.dtype
    assert bool(jnp.all(jnp.isfinite(out)))
    print("KERNEL_OK")
</pallas_src>

<mosaic_0001>
module attributes {stable_mosaic.version = 11 : i64} {
  func.func @kernel(%arg0: i32, %arg1: i32, %arg2: memref<48x512xbf16, #tpu.memory_space<vmem>>, %arg3: memref<8x48xbf16, #tpu.memory_space<vmem>>, %arg4: memref<8x1xf32, #tpu.memory_space<vmem>>, %arg5: memref<8x1xf32, #tpu.memory_space<vmem>>, %arg6: memref<8x512xbf16, #tpu.memory_space<vmem>>, %arg7: memref<8x512xbf16, #tpu.memory_space<vmem>>, %arg8: memref<8x1xf32, #tpu.memory_space<vmem>>, %arg9: memref<8x1xf32, #tpu.memory_space<vmem>>, %arg10: memref<8x1xf32, #tpu.memory_space<vmem>>, %arg11: memref<8x1xf32, #tpu.memory_space<vmem>>) attributes {dimension_semantics = [#tpu.dimension_semantics<arbitrary>, #tpu.dimension_semantics<arbitrary>], iteration_bounds = array<i64: 2, 1>, scalar_prefetch = 0 : i64, scratch_operands = 5 : i64, tpu.core_type = #tpu.core_type<tc>, window_params = [{transform_indices = @transform_0, window_bounds = array<i64: 48, 512>}, {pipeline_mode = #tpu.pipeline_mode<synchronous>, transform_indices = @transform_1, window_bounds = array<i64: 8, 48>}, {pipeline_mode = #tpu.pipeline_mode<synchronous>, transform_indices = @transform_2, window_bounds = array<i64: 8, 1>}, {pipeline_mode = #tpu.pipeline_mode<synchronous>, transform_indices = @transform_3, window_bounds = array<i64: 8, 1>}, {transform_indices = @transform_4, window_bounds = array<i64: 8, 512>}]} {
    %c512_i32 = arith.constant 512 : i32
    %0 = arith.muli %arg1, %c512_i32 : i32
    %1 = tpu.assume_multiple %0, 128 : i32
    %c0_i32 = arith.constant 0 : i32
    %2 = arith.cmpi eq, %arg0, %c0_i32 : i32
    %c0_i32_0 = arith.constant 0 : i32
    %3 = arith.cmpi eq, %arg1, %c0_i32_0 : i32
    %4 = arith.andi %2, %3 : i1
    %5 = arith.extui %4 : i1 to i32
    %c0_i32_1 = arith.constant 0 : i32
    %6 = arith.cmpi ne, %5, %c0_i32_1 : i32
    scf.if %6 {
      %cst = arith.constant 0.000000e+00 : f32
      %18 = vector.broadcast %cst : f32 to vector<8x1xf32>
      %c0 = arith.constant 0 : index
      %c0_8 = arith.constant 0 : index
      %19 = vector.load %arg8[%c0, %c0_8] : memref<8x1xf32, #tpu.memory_space<vmem>>, vector<8x1xf32>
      tpu.vector_store %arg8[%c0, %c0_8], %18 {strides = array<i32>} : memref<8x1xf32, #tpu.memory_space<vmem>>, vector<8x1xf32>,
      %cst_9 = arith.constant 0.000000e+00 : f32
      %20 = vector.broadcast %cst_9 : f32 to vector<8x1xf32>
      %c0_10 = arith.constant 0 : index
      %c0_11 = arith.constant 0 : index
      %21 = vector.load %arg9[%c0_10, %c0_11] : memref<8x1xf32, #tpu.memory_space<vmem>>, vector<8x1xf32>
      tpu.vector_store %arg9[%c0_10, %c0_11], %20 {strides = array<i32>} : memref<8x1xf32, #tpu.memory_space<vmem>>, vector<8x1xf32>,
    } else {
    }
    %c0_i32_2 = arith.constant 0 : i32
    %7 = arith.cmpi eq, %arg0, %c0_i32_2 : i32
    %8 = arith.extui %7 : i1 to i32
    %c0_i32_3 = arith.constant 0 : i32
    %9 = arith.cmpi ne, %8, %c0_i32_3 : i32
    scf.if %9 {
      %c0 = arith.constant 0 : index
      %c0_8 = arith.constant 0 : index
      %18 = vector.load %arg3[%c0, %c0_8] : memref<8x48xbf16, #tpu.memory_space<vmem>>, vector<8x48xbf16>
      %c0_9 = arith.constant 0 : index
      %c0_10 = arith.constant 0 : index
      %19 = vector.load %arg2[%c0_9, %c0_10] : memref<48x512xbf16, #tpu.memory_space<vmem>>, vector<48x512xbf16>
      %cst = arith.constant dense<0.000000e+00> : vector<8x512xf32>
      %20 = tpu.matmul %18, %19, %cst {dimension_numbers = #tpu.dot_dimension_numbers<[1], [0], [0], [1], [0, 0, 1, 1], [], []>} : vector<8x48xbf16>, vector<48x512xbf16>, vector<8x512xf32> -> vector<8x512xf32>
      %c0_11 = arith.constant 0 : index
      %c0_12 = arith.constant 0 : index
      %21 = vector.load %arg8[%c0_11, %c0_12] : memref<8x1xf32, #tpu.memory_space<vmem>>, vector<8x1xf32>
      %cst_13 = arith.constant dense<0.000000e+00> : vector<8xf32>
      %22 = vector.multi_reduction <add>, %20, %cst_13 [1] : vector<8x512xf32> to vector<8xf32>
      %23 = vector.shape_cast %22 : vector<8xf32> to vector<8x1xf32>
      %24 = arith.addf %21, %23 : vector<8x1xf32>
      %c0_14 = arith.constant 0 : index
      %c0_15 = arith.constant 0 : index
      %25 = vector.load %arg8[%c0_14, %c0_15] : memref<8x1xf32, #tpu.memory_space<vmem>>, vector<8x1xf32>
      tpu.vector_store %arg8[%c0_14, %c0_15], %24 {strides = array<i32>} : memref<8x1xf32, #tpu.memory_space<vmem>>, vector<8x1xf32>,
      %c0_16 = arith.constant 0 : index
      %c0_17 = arith.constant 0 : index
      %26 = vector.load %arg9[%c0_16, %c0_17] : memref<8x1xf32, #tpu.memory_space<vmem>>, vector<8x1xf32>
      %27 = arith.mulf %20, %20 : vector<8x512xf32>
      %cst_18 = arith.constant dense<0.000000e+00> : vector<8xf32>
      %28 = vector.multi_reduction <add>, %27, %cst_18 [1] : vector<8x512xf32> to vector<8xf32>
      %29 = vector.shape_cast %28 : vector<8xf32> to vector<8x1xf32>
      %30 = arith.addf %26, %29 : vector<8x1xf32>
      %c0_19 = arith.constant 0 : index
      %c0_20 = arith.constant 0 : index
      %31 = vector.load %arg9[%c0_19, %c0_20] : memref<8x1xf32, #tpu.memory_space<vmem>>, vector<8x1xf32>
      tpu.vector_store %arg9[%c0_19, %c0_20], %30 {strides = array<i32>} : memref<8x1xf32, #tpu.memory_space<vmem>>, vector<8x1xf32>,
      %32 = arith.truncf %20 : vector<8x512xf32> to vector<8x512xbf16>
      %c0_21 = arith.constant 0 : index
      %33 = arith.index_cast %1 : i32 to index
      %34 = vector.load %arg7[%c0_21, %33] : memref<8x512xbf16, #tpu.memory_space<vmem>>, vector<8x512xbf16>
      tpu.vector_store %arg7[%c0_21, %33], %32 {strides = array<i32>} : memref<8x512xbf16, #tpu.memory_space<vmem>>, vector<8x512xbf16>,
    } else {
    }
    %c1_i32 = arith.constant 1 : i32
    %10 = arith.cmpi eq, %arg0, %c1_i32 : i32
    %c0_i32_4 = arith.constant 0 : i32
    %11 = arith.cmpi eq, %arg1, %c0_i32_4 : i32
    %12 = arith.andi %10, %11 : i1
    %13 = arith.extui %12 : i1 to i32
    %c0_i32_5 = arith.constant 0 : i32
    %14 = arith.cmpi ne, %13, %c0_i32_5 : i32
    scf.if %14 {
      %c0 = arith.constant 0 : index
      %c0_8 = arith.constant 0 : index
      %18 = vector.load %arg8[%c0, %c0_8] : memref<8x1xf32, #tpu.memory_space<vmem>>, vector<8x1xf32>
      %cst = arith.constant 0.001953125 : f32
      %19 = vector.broadcast %cst : f32 to vector<8x1xf32>
      %20 = arith.mulf %18, %19 : vector<8x1xf32>
      %c0_9 = arith.constant 0 : index
      %c0_10 = arith.constant 0 : index
      %21 = vector.load %arg9[%c0_9, %c0_10] : memref<8x1xf32, #tpu.memory_space<vmem>>, vector<8x1xf32>
      %cst_11 = arith.constant 0.001953125 : f32
      %22 = vector.broadcast %cst_11 : f32 to vector<8x1xf32>
      %23 = arith.mulf %21, %22 : vector<8x1xf32>
      %24 = arith.mulf %20, %20 : vector<8x1xf32>
      %25 = arith.subf %23, %24 : vector<8x1xf32>
      %cst_12 = arith.constant 0.000000e+00 : f32
      %26 = vector.broadcast %cst_12 : f32 to vector<8x1xf32>
      %27 = arith.maximumf %25, %26 : vector<8x1xf32>
      %c0_13 = arith.constant 0 : index
      %c0_14 = arith.constant 0 : index
      %28 = vector.load %arg4[%c0_13, %c0_14] : memref<8x1xf32, #tpu.memory_space<vmem>>, vector<8x1xf32>
      %cst_15 = arith.constant 9.99999974E-6 : f32
      %29 = vector.broadcast %cst_15 : f32 to vector<8x1xf32>
      %30 = arith.addf %27, %29 : vector<8x1xf32>
      %31 = math.rsqrt %30 : vector<8x1xf32>
      %32 = arith.mulf %28, %31 : vector<8x1xf32>
      %c0_16 = arith.constant 0 : index
      %c0_17 = arith.constant 0 : index
      %33 = vector.load %arg10[%c0_16, %c0_17] : memref<8x1xf32, #tpu.memory_space<vmem>>, vector<8x1xf32>
      tpu.vector_store %arg10[%c0_16, %c0_17], %32 {strides = array<i32>} : memref<8x1xf32, #tpu.memory_space<vmem>>, vector<8x1xf32>,
      %c0_18 = arith.constant 0 : index
      %c0_19 = arith.constant 0 : index
      %34 = vector.load %arg5[%c0_18, %c0_19] : memref<8x1xf32, #tpu.memory_space<vmem>>, vector<8x1xf32>
      %35 = arith.mulf %20, %32 : vector<8x1xf32>
      %36 = arith.subf %34, %35 : vector<8x1xf32>
      %c0_20 = arith.constant 0 : index
      %c0_21 = arith.constant 0 : index
      %37 = vector.load %arg11[%c0_20, %c0_21] : memref<8x1xf32, #tpu.memory_space<vmem>>, vector<8x1xf32>
      tpu.vector_store %arg11[%c0_20, %c0_21], %36 {strides = array<i32>} : memref<8x1xf32, #tpu.memory_space<vmem>>, vector<8x1xf32>,
    } else {
    }
    %c1_i32_6 = arith.constant 1 : i32
    %15 = arith.cmpi eq, %arg0, %c1_i32_6 : i32
    %16 = arith.extui %15 : i1 to i32
    %c0_i32_7 = arith.constant 0 : i32
    %17 = arith.cmpi ne, %16, %c0_i32_7 : i32
    scf.if %17 {
      %c0 = arith.constant 0 : index
      %18 = arith.index_cast %1 : i32 to index
      %19 = vector.load %arg7[%c0, %18] : memref<8x512xbf16, #tpu.memory_space<vmem>>, vector<8x512xbf16>
      %20 = arith.extf %19 : vector<8x512xbf16> to vector<8x512xf32>
      %c0_8 = arith.constant 0 : index
      %c0_9 = arith.constant 0 : index
      %21 = vector.load %arg10[%c0_8, %c0_9] : memref<8x1xf32, #tpu.memory_space<vmem>>, vector<8x1xf32>
      %22 = vector.broadcast %21 : vector<8x1xf32> to vector<8x512xf32>
      %23 = arith.mulf %20, %22 : vector<8x512xf32>
      %c0_10 = arith.constant 0 : index
      %c0_11 = arith.constant 0 : index
      %24 = vector.load %arg11[%c0_10, %c0_11] : memref<8x1xf32, #tpu.memory_space<vmem>>, vector<8x1xf32>
      %25 = vector.broadcast %24 : vector<8x1xf32> to vector<8x512xf32>
      %26 = arith.addf %23, %25 : vector<8x512xf32>
      %cst = arith.constant 0.000000e+00 : f32
      %27 = vector.broadcast %cst : f32 to vector<8x512xf32>
      %28 = arith.maximumf %26, %27 : vector<8x512xf32>
      %29 = arith.truncf %28 : vector<8x512xf32> to vector<8x512xbf16>
      %c0_12 = arith.constant 0 : index
      %c0_13 = arith.constant 0 : index
      %30 = vector.load %arg6[%c0_12, %c0_13] : memref<8x512xbf16, #tpu.memory_space<vmem>>, vector<8x512xbf16>
      tpu.vector_store %arg6[%c0_12, %c0_13], %29 {strides = array<i32>} : memref<8x512xbf16, #tpu.memory_space<vmem>>, vector<8x512xbf16>,
    } else {
    }
    return
  }
  func.func @transform_0(%arg0: i32, %arg1: i32) -> (i32, i32) {
    %c1_i32 = arith.constant 1 : i32
    %0 = arith.subi %c1_i32, %arg0 : i32
    %1 = arith.muli %arg1, %0 : i32
    %c0_i32 = arith.constant 0 : i32
    %c0_i32_0 = arith.constant 0 : i32
    return %c0_i32, %1 : i32, i32
  }
  func.func @transform_1(%arg0: i32, %arg1: i32) -> (i32, i32) {
    %c0_i32 = arith.constant 0 : i32
    %c0_i32_0 = arith.constant 0 : i32
    %c0_i32_1 = arith.constant 0 : i32
    return %c0_i32, %c0_i32_0 : i32, i32
  }
  func.func @transform_2(%arg0: i32, %arg1: i32) -> (i32, i32) {
    %c0_i32 = arith.constant 0 : i32
    %c0_i32_0 = arith.constant 0 : i32
    %c0_i32_1 = arith.constant 0 : i32
    return %c0_i32, %c0_i32_0 : i32, i32
  }
  func.func @transform_3(%arg0: i32, %arg1: i32) -> (i32, i32) {
    %c0_i32 = arith.constant 0 : i32
    %c0_i32_0 = arith.constant 0 : i32
    %c0_i32_1 = arith.constant 0 : i32
    return %c0_i32, %c0_i32_0 : i32, i32
  }
  func.func @transform_4(%arg0: i32, %arg1: i32) -> (i32, i32) {
    %0 = arith.muli %arg1, %arg0 : i32
    %c0_i32 = arith.constant 0 : i32
    %c0_i32_0 = arith.constant 0 : i32
    return %c0_i32, %0 : i32, i32
  }
}

module attributes {stable_mosaic.version = 11 : i64} {
  func.func @_conv_relu_kernel(%arg0: i32, %arg1: memref<48x128xbf16, #tpu.memory_space<vmem>>, %arg2: memref<8x48xbf16, #tpu.memory_space<vmem>>, %arg3: memref<8x128xbf16, #tpu.memory_space<vmem>>) attributes {dimension_semantics = [#tpu.dimension_semantics<parallel>], iteration_bounds = array<i64: 1>, scalar_prefetch = 0 : i64, scratch_operands = 0 : i64, tpu.core_type = #tpu.core_type<tc>, window_params = [{transform_indices = @transform_0, window_bounds = array<i64: 48, 128>}, {pipeline_mode = #tpu.pipeline_mode<synchronous>, transform_indices = @transform_1, window_bounds = array<i64: 8, 48>}, {transform_indices = @transform_2, window_bounds = array<i64: 8, 128>}]} {
    %c0 = arith.constant 0 : index
    %c0_0 = arith.constant 0 : index
    %0 = vector.load %arg2[%c0, %c0_0] : memref<8x48xbf16, #tpu.memory_space<vmem>>, vector<8x48xbf16>
    %c0_1 = arith.constant 0 : index
    %c0_2 = arith.constant 0 : index
    %1 = vector.load %arg1[%c0_1, %c0_2] : memref<48x128xbf16, #tpu.memory_space<vmem>>, vector<48x128xbf16>
    %cst = arith.constant dense<0.000000e+00> : vector<8x128xf32>
    %2 = tpu.matmul %0, %1, %cst {dimension_numbers = #tpu.dot_dimension_numbers<[1], [0], [0], [1], [0, 0, 1, 1], [], []>} : vector<8x48xbf16>, vector<48x128xbf16>, vector<8x128xf32> -> vector<8x128xf32>
    %cst_3 = arith.constant 0.000000e+00 : f32
    %3 = vector.broadcast %cst_3 : f32 to vector<8x128xf32>
    %4 = arith.maximumf %2, %3 : vector<8x128xf32>
    %5 = arith.truncf %4 : vector<8x128xf32> to vector<8x128xbf16>
    %c0_4 = arith.constant 0 : index
    %c0_5 = arith.constant 0 : index
    %6 = vector.load %arg3[%c0_4, %c0_5] : memref<8x128xbf16, #tpu.memory_space<vmem>>, vector<8x128xbf16>
    tpu.vector_store %arg3[%c0_4, %c0_5], %5 {strides = array<i32>} : memref<8x128xbf16, #tpu.memory_space<vmem>>, vector<8x128xbf16>,
    return
  }
  func.func @transform_0(%arg0: i32) -> (i32, i32) {
    %c0_i32 = arith.constant 0 : i32
    %c0_i32_0 = arith.constant 0 : i32
    return %c0_i32, %arg0 : i32, i32
  }
  func.func @transform_1(%arg0: i32) -> (i32, i32) {
    %c0_i32 = arith.constant 0 : i32
    %c0_i32_0 = arith.constant 0 : i32
    %c0_i32_1 = arith.constant 0 : i32
    return %c0_i32, %c0_i32_0 : i32, i32
  }
  func.func @transform_2(%arg0: i32) -> (i32, i32) {
    %c0_i32 = arith.constant 0 : i32
    %c0_i32_0 = arith.constant 0 : i32
    return %c0_i32, %arg0 : i32, i32
  }
}

module attributes {stable_mosaic.version = 11 : i64} {
  func.func @_conv_relu_kernel(%arg0: i32, %arg1: memref<80x128xbf16, #tpu.memory_space<vmem>>, %arg2: memref<8x80xbf16, #tpu.memory_space<vmem>>, %arg3: memref<8x128xf32, #tpu.memory_space<vmem>>) attributes {dimension_semantics = [#tpu.dimension_semantics<parallel>], iteration_bounds = array<i64: 1>, scalar_prefetch = 0 : i64, scratch_operands = 0 : i64, tpu.core_type = #tpu.core_type<tc>, window_params = [{transform_indices = @transform_0, window_bounds = array<i64: 80, 128>}, {pipeline_mode = #tpu.pipeline_mode<synchronous>, transform_indices = @transform_1, window_bounds = array<i64: 8, 80>}, {transform_indices = @transform_2, window_bounds = array<i64: 8, 128>}]} {
    %c0 = arith.constant 0 : index
    %c0_0 = arith.constant 0 : index
    %0 = vector.load %arg2[%c0, %c0_0] : memref<8x80xbf16, #tpu.memory_space<vmem>>, vector<8x80xbf16>
    %c0_1 = arith.constant 0 : index
    %c0_2 = arith.constant 0 : index
    %1 = vector.load %arg1[%c0_1, %c0_2] : memref<80x128xbf16, #tpu.memory_space<vmem>>, vector<80x128xbf16>
    %cst = arith.constant dense<0.000000e+00> : vector<8x128xf32>
    %2 = tpu.matmul %0, %1, %cst {dimension_numbers = #tpu.dot_dimension_numbers<[1], [0], [0], [1], [0, 0, 1, 1], [], []>} : vector<8x80xbf16>, vector<80x128xbf16>, vector<8x128xf32> -> vector<8x128xf32>
    %cst_3 = arith.constant 0.000000e+00 : f32
    %3 = vector.broadcast %cst_3 : f32 to vector<8x128xf32>
    %4 = arith.maximumf %2, %3 : vector<8x128xf32>
    %c0_4 = arith.constant 0 : index
    %c0_5 = arith.constant 0 : index
    %5 = vector.load %arg3[%c0_4, %c0_5] : memref<8x128xf32, #tpu.memory_space<vmem>>, vector<8x128xf32>
    tpu.vector_store %arg3[%c0_4, %c0_5], %4 {strides = array<i32>} : memref<8x128xf32, #tpu.memory_space<vmem>>, vector<8x128xf32>,
    return
  }
  func.func @transform_0(%arg0: i32) -> (i32, i32) {
    %c0_i32 = arith.constant 0 : i32
    %c0_i32_0 = arith.constant 0 : i32
    return %c0_i32, %arg0 : i32, i32
  }
  func.func @transform_1(%arg0: i32) -> (i32, i32) {
    %c0_i32 = arith.constant 0 : i32
    %c0_i32_0 = arith.constant 0 : i32
    %c0_i32_1 = arith.constant 0 : i32
    return %c0_i32, %c0_i32_0 : i32, i32
  }
  func.func @transform_2(%arg0: i32) -> (i32, i32) {
    %c0_i32 = arith.constant 0 : i32
    %c0_i32_0 = arith.constant 0 : i32
    return %c0_i32, %arg0 : i32, i32
  }
}

</mosaic_0001>

<llo_original>
// kernel: _forward.3
$region0: #{_forward.3}
  #allocation0 [shape = 'u32[]', space=smem, size = 0x4, offset = 0x4, fixed_abs, tag = 'smem constant byte address 0x4 - core index']
  #allocation1 [shape = 'u32[144,128]{1,0:T(1,128)}', space=vmem, size = 0x12000, scoped, tag = 'internal scratch']
  #allocation2 [shape = 'bf16[8,512]{1,0:T(8,128)(2,1)}', space=vmem, size = 0x2000, scoped, tag = 'scratch operand']
  #allocation3 [shape = 'f32[8,1]{1,0:T(8,128)}', space=vmem, size = 0x1000, scoped, tag = 'scratch operand']
  #allocation4 [shape = 'f32[8,1]{1,0:T(8,128)}', space=vmem, size = 0x1000, scoped, tag = 'scratch operand']
  #allocation5 [shape = 'f32[8,1]{1,0:T(8,128)}', space=vmem, size = 0x1000, scoped, tag = 'scratch operand']
  #allocation6 [shape = 'f32[8,1]{1,0:T(8,128)}', space=vmem, size = 0x1000, scoped, tag = 'scratch operand']
  %s0 = inlined_call_operand.vmem [shape: bf16[48,512], index: 0, kind: input, shape index: {}]
  %s1 = inlined_call_operand.vmem [shape: bf16[8,48], index: 1, kind: input, shape index: {}]
  %s2 = inlined_call_operand.vmem [shape: f32[8,1], index: 2, kind: input, shape index: {}]
  %s3 = inlined_call_operand.vmem [shape: f32[8,1], index: 3, kind: input, shape index: {}]
  %s4 = inlined_call_operand.vmem [shape: bf16[8,512], index: 4, kind: output, shape index: {}]
  %s5 = sld [smem:[#allocation0]]
  $region65: #{_forward.3} parent=0
    _
  %s7 = ssub.s32 1, %s5
  %s8 = scalar_select 0, %s7, %s5
  loop: start=0, step=1, limit=4
  $region2: #{_forward.3} parent=0 // loop_pre_header
    _
  $region3: #{_forward.3} parent=0 // loop_header
    %s10 = sphi 0, %s14
    %p11 = scmp.ge.s32.totalorder %s10, 4
    %s17 = sphi 0, %s29
    %s18 = sphi 0, %s25
    %s19 = sphi 0, %s17
    %s20 = sphi 0, %s18
    %s21 = sphi 0, %s19
    %s22 = sphi 0, %s20
    %s36 = sphi 0, %s38
    %s39 = sphi 0, %s36
    %s40 = sphi 0, %s39
    %s56 = sphi 0, %s40
    %s60 = sphi 0, %s60
    %s62 = sphi 0, %s60
    %s63 = sphi 0, %s62
    %s77 = sphi 0, %s63
    %s81 = sphi 0, %s81
    %s83 = sphi 0, %s81
    %s84 = sphi 0, %s83
    %s98 = sphi 0, %s84
    %s102 = sphi 0, %s102
    %s104 = sphi 0, %s102
    %s105 = sphi 0, %s104
    %s119 = sphi 0, %s105
    %s127 = sphi 0, %s129
    %s130 = sphi 0, %s127
    %s131 = sphi 0, %s130
    %s147 = sphi 0, %s131
  $region4: #{_forward.3} parent=0 // loop_header_branch
    %13 = sbr.rel (%p11) target = $region8
  $region5: #{_forward.3} parent=0 // loop_body
    %s15 = ssub.s32 %s10, 1
    %s16 = ssub.s32 %s10, 2
    %s23 = sadd.s32 1, %s18
    %p24 = scmp.ge.s32.totalorder %s23, 1
    %s25 = scalar_select %p24, 0, %s23
    %s26 = sadd.s32 1, %s17
    %s27 = scalar_select %p24, %s26, %s17
    %p28 = scmp.ge.s32.totalorder %s27, 2
    %s29 = scalar_select %p28, 0, %s27
    %s30 = ssub.s32 1, %s17
    %s31 = smul.u32 %s18, %s30
    %s32 = ssub.s32 1, %s29
    %s33 = smul.u32 %s25, %s32
    %s34 = ssub.s32 %s31, %s33
    %p35 = scmp.eq.s32.totalorder %s34, 0
    %s37 = sadd.s32 %s36, 1
    %s38 = scalar_select %p35, %s36, %s37
    %p41 = pneg %p35
    %p42 = scmp.eq.s32.totalorder %s10, 1
    %p43 = por %p41, %p42
    %p44 = scmp.ne.s32.totalorder %s36, %s39
    %p45 = scmp.eq.s32.totalorder %s10, 0
    %p46 = por %p44, %p45
    %p47 = scmp.ne.s32.totalorder %s36, %s39
    %p48 = scmp.eq.s32.totalorder %s15, 1
    %p49 = por %p47, %p48
    %p50 = scmp.ne.s32.totalorder %s39, %s40
    %p51 = scmp.eq.s32.totalorder %s15, 0
    %p52 = por %p50, %p51
    %p53 = scmp.ne.s32.totalorder %s39, %s40
    %p54 = scmp.eq.s32.totalorder %s16, 1
    %p55 = por %p53, %p54
    %p57 = scmp.ne.s32.totalorder %s40, %s56
    %p58 = scmp.eq.s32.totalorder %s16, 0
    %p59 = por %p57, %p58
    %s61 = sadd.s32 %s60, 1
    %p64 = scmp.eq.s32.totalorder %s10, 1
    %p65 = scmp.ne.s32.totalorder %s60, %s62
    %p66 = scmp.eq.s32.totalorder %s10, 0
    %p67 = por %p65, %p66
    %p68 = scmp.ne.s32.totalorder %s60, %s62
    %p69 = scmp.eq.s32.totalorder %s15, 1
    %p70 = por %p68, %p69
    %p71 = scmp.ne.s32.totalorder %s62, %s63
    %p72 = scmp.eq.s32.totalorder %s15, 0
    %p73 = por %p71, %p72
    %p74 = scmp.ne.s32.totalorder %s62, %s63
    %p75 = scmp.eq.s32.totalorder %s16, 1
    %p76 = por %p74, %p75
    %p78 = scmp.ne.s32.totalorder %s63, %s77
    %p79 = scmp.eq.s32.totalorder %s16, 0
    %p80 = por %p78, %p79
    %s82 = sadd.s32 %s81, 1
    %p85 = scmp.eq.s32.totalorder %s10, 1
    %p86 = scmp.ne.s32.totalorder %s81, %s83
    %p87 = scmp.eq.s32.totalorder %s10, 0
    %p88 = por %p86, %p87
    %p89 = scmp.ne.s32.totalorder %s81, %s83
    %p90 = scmp.eq.s32.totalorder %s15, 1
    %p91 = por %p89, %p90
    %p92 = scmp.ne.s32.totalorder %s83, %s84
    %p93 = scmp.eq.s32.totalorder %s15, 0
    %p94 = por %p92, %p93
    %p95 = scmp.ne.s32.totalorder %s83, %s84
    %p96 = scmp.eq.s32.totalorder %s16, 1
    %p97 = por %p95, %p96
    %p99 = scmp.ne.s32.totalorder %s84, %s98
    %p100 = scmp.eq.s32.totalorder %s16, 0
    %p101 = por %p99, %p100
    %s103 = sadd.s32 %s102, 1
    %p106 = scmp.eq.s32.totalorder %s10, 1
    %p107 = scmp.ne.s32.totalorder %s102, %s104
    %p108 = scmp.eq.s32.totalorder %s10, 0
    %p109 = por %p107, %p108
    %p110 = scmp.ne.s32.totalorder %s102, %s104
    %p111 = scmp.eq.s32.totalorder %s15, 1
    %p112 = por %p110, %p111
    %p113 = scmp.ne.s32.totalorder %s104, %s105
    %p114 = scmp.eq.s32.totalorder %s15, 0
    %p115 = por %p113, %p114
    %p116 = scmp.ne.s32.totalorder %s104, %s105
    %p117 = scmp.eq.s32.totalorder %s16, 1
    %p118 = por %p116, %p117
    %p120 = scmp.ne.s32.totalorder %s105, %s119
    %p121 = scmp.eq.s32.totalorder %s16, 0
    %p122 = por %p120, %p121
    %s123 = smul.u32 %s18, %s17
    %s124 = smul.u32 %s25, %s29
    %s125 = ssub.s32 %s123, %s124
    %p126 = scmp.eq.s32.totalorder %s125, 0
    %s128 = sadd.s32 %s127, 1
    %s129 = scalar_select %p126, %s127, %s128
    %p132 = pneg %p126
    %p133 = scmp.eq.s32.totalorder %s10, 1
    %p134 = por %p132, %p133
    %p135 = scmp.ne.s32.totalorder %s127, %s130
    %p136 = scmp.eq.s32.totalorder %s10, 0
    %p137 = por %p135, %p136
    %p138 = scmp.ne.s32.totalorder %s127, %s130
    %p139 = scmp.eq.s32.totalorder %s15, 1
    %p140 = por %p138, %p139
    %p141 = scmp.ne.s32.totalorder %s130, %s131
    %p142 = scmp.eq.s32.totalorder %s15, 0
    %p143 = por %p141, %p142
    %p144 = scmp.ne.s32.totalorder %s130, %s131
    %p145 = scmp.eq.s32.totalorder %s16, 1
    %p146 = por %p144, %p145
    %p148 = scmp.ne.s32.totalorder %s131, %s147
    %p149 = scmp.eq.s32.totalorder %s16, 0
    %p150 = por %p148, %p149
    %p151 = scmp.le.s32.totalorder 1, %s10
    %p152 = scmp.lt.s32.totalorder %s10, 3
    %p153 = pnand %p151, %p152
    %p154 = pneg %p153
    // Predicated region
    $region9: #{_forward.3} parent=5 // pred_check
      _
    $region10: #{_forward.3} parent=5 // pred_check_branch
      %156 = sbr.rel (%p153) target = $region12
    $region11: #{_forward.3} parent=5 // pred_region
      %s157 = ssub.s32 %s10, 1
      // Predicated region
      $region13: #{_forward.3} parent=11 // pred_check
        %p158 = pneg %p73
      $region14: #{_forward.3} parent=11 // pred_check_branch
        %160 = sbr.rel (%p158) target = $region16
      $region15: #{_forward.3} parent=11 // pred_region
        _
      $region16: #{_forward.3} parent=11 // pred_fallthru
        _
      // Predicated region
      $region17: #{_forward.3} parent=11 // pred_check
        %p161 = pneg %p94
      $region18: #{_forward.3} parent=11 // pred_check_branch
        %163 = sbr.rel (%p161) target = $region20
      $region19: #{_forward.3} parent=11 // pred_region
        _
      $region20: #{_forward.3} parent=11 // pred_fallthru
        _
      // Predicated region
      $region21: #{_forward.3} parent=11 // pred_check
        %p164 = pneg %p115
      $region22: #{_forward.3} parent=11 // pred_check_branch
        %166 = sbr.rel (%p164) target = $region24
      $region23: #{_forward.3} parent=11 // pred_region
        _
      $region24: #{_forward.3} parent=11 // pred_fallthru
        _
    $region12: #{_forward.3} parent=5 // pred_fallthru
      _
    %p167 = scmp.lt.s32.totalorder %s10, 2
    // Predicated region
    $region25: #{_forward.3} parent=5 // pred_check
      %p168 = pneg %p167
    $region26: #{_forward.3} parent=5 // pred_check_branch
      %170 = sbr.rel (%p168) target = $region28
    $region27: #{_forward.3} parent=5 // pred_region
      // Predicated region
      $region29: #{_forward.3} parent=27 // pred_check
        %p171 = pneg %p46
      $region30: #{_forward.3} parent=27 // pred_check_branch
        %173 = sbr.rel (%p171) target = $region32
      $region31: #{_forward.3} parent=27 // pred_region
        %s174 = ssub.s32 1, %s17
        %s175 = smul.u32 %s18, %s174
        %s176 = smul.u32 4, %s175
        %p177 = scmp.lt.s32.totalorder %s176, 3
        %s178 = scalar_select %p177, %s176, 3
        %s179 = smul.addr %s178, 4
        %s180 = scalar_lea.vmem %s0, %s179
        %s181 = ssub.s32 1, %s17
        %s182 = smul.u32 %s18, %s181
        %s183 = smul.u32 4, %s182
      $region32: #{_forward.3} parent=27 // pred_fallthru
        _
    $region28: #{_forward.3} parent=5 // pred_fallthru
      _
    %p184 = scmp.le.s32.totalorder 1, %s10
    %p185 = scmp.lt.s32.totalorder %s10, 3
    %p186 = pnand %p184, %p185
    %p187 = pneg %p186
    // Predicated region
    $region33: #{_forward.3} parent=5 // pred_check
      _
    $region34: #{_forward.3} parent=5 // pred_check_branch
      %189 = sbr.rel (%p186) target = $region36
    $region35: #{_forward.3} parent=5 // pred_region
      %s190 = ssub.s32 %s10, 1
      %s191 = ssub.s32 1, %s19
      %s192 = smul.u32 %s20, %s191
      %s193 = smul.u32 4, %s192
      %p194 = scmp.lt.s32.totalorder %s193, 3
      %s195 = scalar_select %p194, %s193, 3
      %s196 = smul.addr %s195, 4
      %s197 = scalar_lea.vmem %s0, %s196
      %p198 = pneg %p52
      %p199 = pneg %p49
      %p200 = pneg %p73
      %p201 = pneg %p70
      %p202 = pneg %p94
      %p203 = pneg %p91
      %p204 = pneg %p115
      %p205 = pneg %p112
      %p206 = pneg %p143
      %p207 = pneg %p140
      %s208 = smul.u32 %s20, %s19
      %s209 = smul.u32 4, %s208
      %p210 = scmp.lt.s32.totalorder %s209, 3
      %s211 = scalar_select %p210, %s209, 3
      %s212 = smul.addr %s211, 4
      %s213 = scalar_lea.vmem %s4, %s212
      %s214 = ssub.s32 1, %s19
      %s215 = smul.u32 %s20, %s214
      %s216 = smul.u32 4, %s215
      %p217 = scmp.lt.s32.totalorder %s216, 3
      %s218 = scalar_select %p217, %s216, 3
      %s219 = smul.addr %s218, 4
      %s220 = scalar_lea.vmem %s0, %s219
      %s221 = ssub.s32 1, %s19
      %s222 = smul.u32 %s20, %s221
      %s223 = smul.u32 4, %s222
      %s224 = smul.u32 %s20, %s19
      %s225 = smul.u32 4, %s224
      %p226 = scmp.lt.s32.totalorder %s225, 3
      %s227 = scalar_select %p226, %s225, 3
      %s228 = smul.addr %s227, 4
      %s229 = scalar_lea.vmem %s4, %s228
      %s230 = smul.u32 %s20, %s19
      %s231 = smul.u32 4, %s230
      %s233 = smul.u32 %s20, 512
      %p234 = scmp.eq.s32.totalorder %s19, 0
      %p235 = scmp.eq.s32.totalorder %s20, 0
      %p236 = pnand %p234, %p235
      %p237 = pneg %p236
      // Predicated region
      $region37: #{_forward.3} parent=35 // pred_check
        _
      $region38: #{_forward.3} parent=35 // pred_check_branch
        %239 = sbr.rel (%p236) target = $region40
      $region39: #{_forward.3} parent=35 // pred_region
        %vm240 = vcmask 7168
        %241 = vst.msk [vmem:[#allocation3] sm:$0xff] %vm240, 0.0
        %242 = vst.msk [vmem:[#allocation4] sm:$0xff] %vm240, 0.0
      $region40: #{_forward.3} parent=35 // pred_fallthru
        _
      // Predicated region
      $region41: #{_forward.3} parent=35 // pred_check
        %p243 = pneg %p234
      $region42: #{_forward.3} parent=35 // pred_check_branch
        %245 = sbr.rel (%p243) target = $region44
      $region43: #{_forward.3} parent=35 // pred_region
        %v246 = vld [vmem:[%s1] sm:$0xf]
        %v247 = vld [vmem:[%s220] sm:$0xff]
        %v248 = vld [vmem:[%s220 + $0x8] sm:$0xff]
        %v249 = vld [vmem:[%s220 + $0x10] sm:$0xff]
        %v250 = vld [vmem:[%s220 + $0x18] sm:$0xff]
        %v251 = vld [vmem:[%s220 + $0x20] sm:$0xff]
        %v252 = vld [vmem:[%s220 + $0x28] sm:$0xff]
        %v253 = vld [vmem:[%s220 + $0x30] sm:$0xff]
        %v254 = vld [vmem:[%s220 + $0x38] sm:$0xff]
        %v255 = vld [vmem:[%s220 + $0x40] sm:$0xff]
        %v256 = vld [vmem:[%s220 + $0x48] sm:$0xff]
        %v257 = vld [vmem:[%s220 + $0x50] sm:$0xff]
        %v258 = vld [vmem:[%s220 + $0x58] sm:$0xff]
        %v271 = vunpack.c.l.b16 %v247
        %v272 = vunpack.c.h.b16 %v247
        %v273 = vunpack.c.l.b16 %v248
        %v274 = vunpack.c.h.b16 %v248
        %v275 = vunpack.c.l.b16 %v249
        %v276 = vunpack.c.h.b16 %v249
        %v277 = vunpack.c.l.b16 %v250
        %v278 = vunpack.c.h.b16 %v250
        %v279 = vunpack.c.l.b16 %v251
        %v280 = vunpack.c.h.b16 %v251
        %v281 = vunpack.c.l.b16 %v252
        %v282 = vunpack.c.h.b16 %v252
        %v283 = vunpack.c.l.b16 %v253
        %v284 = vunpack.c.h.b16 %v253
        %v285 = vunpack.c.l.b16 %v254
        %v286 = vunpack.c.h.b16 %v254
        %v287 = vunpack.c.l.b16 %v255
        %v288 = vunpack.c.h.b16 %v255
        %v289 = vunpack.c.l.b16 %v256
        %v290 = vunpack.c.h.b16 %v256
        %v291 = vunpack.c.l.b16 %v257
        %v292 = vunpack.c.h.b16 %v257
        %v293 = vunpack.c.l.b16 %v258
        %v294 = vunpack.c.h.b16 %v258
        %v295 = vpack.c.b16 %v275, %v271
        %v296 = vpack.c.b16 %v276, %v272
        %v297 = vpack.c.b16 %v277, %v273
        %v298 = vpack.c.b16 %v278, %v274
        %v299 = vpack.c.b16 %v283, %v279
        %v300 = vpack.c.b16 %v284, %v280
        %v301 = vpack.c.b16 %v285, %v281
        %v302 = vpack.c.b16 %v286, %v282
        %v303 = vpack.c.b16 %v291, %v287
        %v304 = vpack.c.b16 %v292, %v288
        %v305 = vpack.c.b16 %v293, %v289
        %v306 = vpack.c.b16 %v294, %v290
        %vm319 = vcmask 392192
        %v321 = vsel %vm319, %v246, 0
        %323 = vmatprep.subr.bf16.mxu0 %v296
        %324 = vmatpush1.bf16.msra.mxu0 %v295
        %325 = vmatprep.subr.bf16.mxu0 %v300
        %326 = vmatpush1.bf16.msra.mxu0 %v299
        %327 = vmatprep.subr.bf16.mxu0 %v304
        %328 = vmatpush1.bf16.msra.mxu0 %v303
        %329 = vmatprep.subr.bf16.mxu0 0
        %330 = vmatpush1.bf16.msra.mxu0 0
        %331 = vmatprep.subr.bf16.mxu0 0
        %332 = vmatpush1.bf16.msra.mxu0 0
        %333 = vmatprep.subr.bf16.mxu0 0
        %334 = vmatpush1.bf16.msra.mxu0 0
        %335 = vmatprep.subr.bf16.mxu0 0
        %336 = vmatpush1.bf16.msra.mxu0 0
        %337 = vmatprep.subr.bf16.mxu0 0
        %338 = vmatpush1.bf16.msra.mxu0 0
        %339 = vmatprep.subr.bf16.mxu0 0
        %340 = vmatpush1.bf16.msra.mxu0 0
        %341 = vmatprep.subr.bf16.mxu0 0
        %342 = vmatpush1.bf16.msra.mxu0 0
        %343 = vmatprep.subr.bf16.mxu0 0
        %344 = vmatpush1.bf16.msra.mxu0 0
        %345 = vmatprep.subr.bf16.mxu0 0
        %346 = vmatpush1.bf16.msra.mxu0 0
        %347 = vmatprep.subr.bf16.mxu0 0
        %348 = vmatpush1.bf16.msra.mxu0 0
        %349 = vmatprep.subr.bf16.mxu0 0
        %350 = vmatpush1.bf16.msra.mxu0 0
        %351 = vmatprep.subr.bf16.mxu0 0
        %352 = vmatpush1.bf16.msra.mxu0 0
        %353 = vmatprep.subr.bf16.mxu0 0
        %354 = vmatpush1.bf16.msra.mxu0 0
        %355 = vmatprep.mubr.bf16.mxu0 0
        %356 = vmatmul.mubr.bf16.gmra.mrb[0].mxu0 %v321
        %v357 = vpop.f32.mrb[0].mxu0
        %v358 = vadd.f32 0.0, %v357
        %v359 = vpop.f32.mrb[0].mxu0
        %v360 = vadd.f32 0.0, %v359
        %v361 = vpop.f32.mrb[0].mxu0
        %v362 = vpop.f32.mrb[0].mxu0
        %363 = vdwg.mxu0
        %364 = vmatprep.subr.bf16.mxu0 %v298
        %365 = vmatpush1.bf16.msra.mxu0 %v297
        %366 = vmatprep.subr.bf16.mxu0 %v302
        %367 = vmatpush1.bf16.msra.mxu0 %v301
        %368 = vmatprep.subr.bf16.mxu0 %v306
        %369 = vmatpush1.bf16.msra.mxu0 %v305
        %370 = vmatprep.subr.bf16.mxu0 0
        %371 = vmatpush1.bf16.msra.mxu0 0
        %372 = vmatprep.subr.bf16.mxu0 0
        %373 = vmatpush1.bf16.msra.mxu0 0
        %374 = vmatprep.subr.bf16.mxu0 0
        %375 = vmatpush1.bf16.msra.mxu0 0
        %376 = vmatprep.subr.bf16.mxu0 0
        %377 = vmatpush1.bf16.msra.mxu0 0
        %378 = vmatprep.subr.bf16.mxu0 0
        %379 = vmatpush1.bf16.msra.mxu0 0
        %380 = vmatprep.subr.bf16.mxu0 0
        %381 = vmatpush1.bf16.msra.mxu0 0
        %382 = vmatprep.subr.bf16.mxu0 0
        %383 = vmatpush1.bf16.msra.mxu0 0
        %384 = vmatprep.subr.bf16.mxu0 0
        %385 = vmatpush1.bf16.msra.mxu0 0
        %386 = vmatprep.subr.bf16.mxu0 0
        %387 = vmatpush1.bf16.msra.mxu0 0
        %388 = vmatprep.subr.bf16.mxu0 0
        %389 = vmatpush1.bf16.msra.mxu0 0
        %390 = vmatprep.subr.bf16.mxu0 0
        %391 = vmatpush1.bf16.msra.mxu0 0
        %392 = vmatprep.subr.bf16.mxu0 0
        %393 = vmatpush1.bf16.msra.mxu0 0
        %394 = vmatprep.subr.bf16.mxu0 0
        %395 = vmatpush1.bf16.msra.mxu0 0
        %396 = vmatprep.mubr.bf16.mxu0 0
        %397 = vmatmul.mubr.bf16.gmra.mrb[0].mxu0 %v321
        %v398 = vpop.f32.mrb[0].mxu0
        %v399 = vadd.f32 0.0, %v398
        %v400 = vpop.f32.mrb[0].mxu0
        %v401 = vadd.f32 0.0, %v400
        %v402 = vpop.f32.mrb[0].mxu0
        %v403 = vpop.f32.mrb[0].mxu0
        %404 = vdwg.mxu0
        %v405 = vld [vmem:[#allocation3] sm:$0xff]
        %v406 = vadd.f32 %v358, %v360
        %v407 = vadd.f32 %v406, %v399
        %v408 = vadd.f32 %v407, %v401
        %409 = vadd.xlane.f32.xlu0 %v408
        %v410 = vpop.xlane.xlu0 %409
        %v411 = vadd.f32 %v405, %v410
        %vm412 = vcmask 7168
        %413 = vst.msk [vmem:[#allocation3] sm:$0xff] %vm412, %v411
        %v414 = vld [vmem:[#allocation4] sm:$0xff]
        %v415 = vmul.f32 %v358, %v358
        %v416 = vmul.f32 %v360, %v360
        %v417 = vmul.f32 %v399, %v399
        %v418 = vmul.f32 %v401, %v401
        %v419 = vadd.f32 %v415, %v416
        %v420 = vadd.f32 %v419, %v417
        %v421 = vadd.f32 %v420, %v418
        %422 = vadd.xlane.f32.xlu0 %v421
        %v423 = vpop.xlane.xlu0 %422
        %v424 = vadd.f32 %v414, %v423
        %425 = vst.msk [vmem:[#allocation4] sm:$0xff] %vm412, %v424
        %v426 = vpack.c.bf16 %v358, %v358
        %v427 = vpack.c.bf16 %v360, %v360
        %v428 = vpack.c.bf16 %v399, %v399
        %v429 = vpack.c.bf16 %v401, %v401
        %v434 = vunpack.c.l.b16 %v426
        %v435 = vunpack.c.l.b16 %v427
        %v436 = vunpack.c.l.b16 %v428
        %v437 = vunpack.c.l.b16 %v429
        %v438 = vpack.c.b16 %v435, %v434
        %v439 = vpack.c.b16 %v437, %v436
        %s442 = sshra.s32 %s233, 7
        %s443 = sand.u32 %s233, 127
        %s444 = smul.addr %s442, 4
        %s445 = scalar_lea.vmem [#allocation2], %s444
        %446 = vst [vmem:[%s445] sm:$0xff] %v438
        %447 = vst [vmem:[%s445 + $0x8] sm:$0xff] %v439
      $region44: #{_forward.3} parent=35 // pred_fallthru
        _
      %p448 = scmp.eq.s32.totalorder %s19, 1
      %p449 = pnand %p448, %p235
      %p450 = pneg %p449
      // Predicated region
      $region45: #{_forward.3} parent=35 // pred_check
        _
      $region46: #{_forward.3} parent=35 // pred_check_branch
        %452 = sbr.rel (%p449) target = $region48
      $region47: #{_forward.3} parent=35 // pred_region
        %v453 = vld [vmem:[#allocation3] sm:$0xff]
        %v454 = vmul.f32 %v453, 0.001953125
        %v455 = vld [vmem:[#allocation4] sm:$0xff]
        %v456 = vmul.f32 %v455, 0.001953125
        %v457 = vmul.f32 %v454, %v454
        %v458 = vsub.f32 %v456, %v457
        %v459 = vmax.f32 %v458, 0.0
        %v460 = vld [vmem:[%s2] sm:$0xff]
        %v461 = vadd.f32 %v459, 1e-05
        %v462 = vrsqrt.pop %v461
        %v463 = vmul.f32 %v460, %v462
        %vm464 = vcmask 7168
        %465 = vst.msk [vmem:[#allocation5] sm:$0xff] %vm464, %v463
        %v466 = vld [vmem:[%s3] sm:$0xff]
        %v467 = vmul.f32 %v454, %v463
        %v468 = vsub.f32 %v466, %v467
        %469 = vst.msk [vmem:[#allocation6] sm:$0xff] %vm464, %v468
      $region48: #{_forward.3} parent=35 // pred_fallthru
        _
      // Predicated region
      $region49: #{_forward.3} parent=35 // pred_check
        %p470 = pneg %p448
      $region50: #{_forward.3} parent=35 // pred_check_branch
        %472 = sbr.rel (%p470) target = $region52
      $region51: #{_forward.3} parent=35 // pred_region
        %s473 = sshra.s32 %s233, 7
        %s474 = sand.u32 %s233, 127
        %s475 = smul.addr %s473, 4
        %s476 = scalar_lea.vmem [#allocation2], %s475
        %v477 = vld [vmem:[%s476] sm:$0xff]
        %v478 = vld [vmem:[%s476 + $0x8] sm:$0xff]
        %v479 = vunpack.c.l.bf16 %v477
        %v480 = vunpack.c.h.bf16 %v477
        %v481 = vunpack.c.l.bf16 %v478
        %v482 = vunpack.c.h.bf16 %v478
        %v483 = vld [vmem:[#allocation5] sm:$0xff]
        %485 = vset.pattern.permute.xlu0 0
        %486 = vperm.xlu0 %485, %v483
        %v487 = vpop.permute.xlu0 %486
        %v489 = vmul.f32 %v479, %v487
        %v490 = vmul.f32 %v480, %v487
        %v491 = vmul.f32 %v481, %v487
        %v492 = vmul.f32 %v482, %v487
        %v493 = vld [vmem:[#allocation6] sm:$0xff]
        %495 = vset.pattern.permute.xlu0 0
        %496 = vperm.xlu0 %495, %v493
        %v497 = vpop.permute.xlu0 %496
        %v499 = vadd.f32 %v489, %v497
        %v500 = vadd.f32 %v490, %v497
        %v501 = vadd.f32 %v491, %v497
        %v502 = vadd.f32 %v492, %v497
        %v503 = vmax.f32 %v499, 0.0
        %v504 = vmax.f32 %v500, 0.0
        %v505 = vmax.f32 %v501, 0.0
        %v506 = vmax.f32 %v502, 0.0
        %v507 = vpack.c.bf16 %v503, %v503
        %v508 = vpack.c.bf16 %v504, %v504
        %v509 = vpack.c.bf16 %v505, %v505
        %v510 = vpack.c.bf16 %v506, %v506
        %v515 = vunpack.c.l.b16 %v507
        %v516 = vunpack.c.l.b16 %v508
        %v517 = vunpack.c.l.b16 %v509
        %v518 = vunpack.c.l.b16 %v510
        %v519 = vpack.c.b16 %v516, %v515
        %v520 = vpack.c.b16 %v518, %v517
        %523 = vst [vmem:[%s229] sm:$0xff] %v519
        %524 = vst [vmem:[%s229 + $0x8] sm:$0xff] %v520
      $region52: #{_forward.3} parent=35 // pred_fallthru
        _
      %s525 = smul.u32 %s20, %s19
      %s526 = smul.u32 4, %s525
      %p527 = scmp.lt.s32.totalorder %s526, 3
      %s528 = scalar_select %p527, %s526, 3
      %s529 = smul.addr %s528, 4
      %s530 = scalar_lea.vmem %s4, %s529
      // Predicated region
      $region53: #{_forward.3} parent=35 // pred_check
        %p531 = pneg %p140
      $region54: #{_forward.3} parent=35 // pred_check_branch
        %533 = sbr.rel (%p531) target = $region56
      $region55: #{_forward.3} parent=35 // pred_region
        %s534 = smul.u32 %s20, %s19
        %s535 = smul.u32 4, %s534
      $region56: #{_forward.3} parent=35 // pred_fallthru
        _
    $region36: #{_forward.3} parent=5 // pred_fallthru
      _
    %p536 = scmp.le.s32.totalorder 2, %s10
    // Predicated region
    $region57: #{_forward.3} parent=5 // pred_check
      %p537 = pneg %p536
    $region58: #{_forward.3} parent=5 // pred_check_branch
      %539 = sbr.rel (%p537) target = $region60
    $region59: #{_forward.3} parent=5 // pred_region
      %s540 = ssub.s32 %s10, 2
      // Predicated region
      $region61: #{_forward.3} parent=59 // pred_check
        %p541 = pneg %p146
      $region62: #{_forward.3} parent=59 // pred_check_branch
        %543 = sbr.rel (%p541) target = $region64
      $region63: #{_forward.3} parent=59 // pred_region
        %s544 = smul.u32 %s22, %s21
        %s545 = smul.u32 4, %s544
        %p546 = scmp.lt.s32.totalorder %s545, 3
        %s547 = scalar_select %p546, %s545, 3
        %s548 = smul.addr %s547, 4
        %s549 = scalar_lea.vmem %s4, %s548
      $region64: #{_forward.3} parent=59 // pred_fallthru
        _
    $region60: #{_forward.3} parent=5 // pred_fallthru
      _
  $region6: #{_forward.3} parent=0 // loop_footer
    %s14 = sadd.s32 1, %s10
  $region7: #{_forward.3} parent=0 // loop_footer_branch
    %9 = sbr.rel target = $region3
  $region8: #{_forward.3} parent=0 // loop_exit
    _

// kernel: _forward.4
$region0: #{_forward.4}
  #allocation0 [shape = 'u32[]', space=smem, size = 0x4, offset = 0x4, fixed_abs, tag = 'smem constant byte address 0x4 - core index']
  #allocation1 [shape = 'u32[144,128]{1,0:T(1,128)}', space=vmem, size = 0x12000, scoped, tag = 'internal scratch']
  %s0 = inlined_call_operand.vmem [shape: bf16[48,128], index: 0, kind: input, shape index: {}]
  %s1 = inlined_call_operand.vmem [shape: bf16[8,48], index: 1, kind: input, shape index: {}]
  %s2 = inlined_call_operand.vmem [shape: bf16[8,128], index: 2, kind: output, shape index: {}]
  %s3 = sld [smem:[#allocation0]]
  $region18: #{_forward.4} parent=0
    _
  %s5 = ssub.s32 1, %s3
  %s6 = scalar_select 0, %s5, %s3
  // Predicated region
  $region2: #{_forward.4} parent=0 // pred_check
    _
  $region3: #{_forward.4} parent=0 // pred_check_branch
    %8 = sbr.rel (0) target = $region5
  $region4: #{_forward.4} parent=0 // pred_region
    _
  $region5: #{_forward.4} parent=0 // pred_fallthru
    _
  // Predicated region
  $region6: #{_forward.4} parent=0 // pred_check
    _
  $region7: #{_forward.4} parent=0 // pred_check_branch
    %10 = sbr.rel (0) target = $region9
  $region8: #{_forward.4} parent=0 // pred_region
    _
  $region9: #{_forward.4} parent=0 // pred_fallthru
    _
  %v12 = vld [vmem:[%s1] sm:$0xf]
  %v13 = vld [vmem:[%s0] sm:$0xf]
  %v14 = vld [vmem:[%s0 + $0x4] sm:$0xf]
  %v15 = vld [vmem:[%s0 + $0x8] sm:$0xf]
  %v16 = vld [vmem:[%s0 + $0xc] sm:$0xf]
  %v17 = vld [vmem:[%s0 + $0x10] sm:$0xf]
  %v18 = vld [vmem:[%s0 + $0x14] sm:$0xf]
  %v25 = vunpack.c.l.b16 %v13
  %v26 = vunpack.c.l.b16 %v14
  %v27 = vunpack.c.l.b16 %v15
  %v28 = vunpack.c.l.b16 %v16
  %v29 = vunpack.c.l.b16 %v17
  %v30 = vunpack.c.l.b16 %v18
  %v31 = vpack.c.b16 %v26, %v25
  %v32 = vpack.c.b16 %v28, %v27
  %v33 = vpack.c.b16 %v30, %v29
  %vm37 = vcmask 392192
  %v39 = vsel %vm37, %v12, 0
  %41 = vmatprep.subr.bf16.mxu0 0
  %42 = vmatpush1.bf16.msra.mxu0 %v31
  %43 = vmatprep.subr.bf16.mxu0 0
  %44 = vmatpush1.bf16.msra.mxu0 %v32
  %45 = vmatprep.subr.bf16.mxu0 0
  %46 = vmatpush1.bf16.msra.mxu0 %v33
  %47 = vmatprep.subr.bf16.mxu0 0
  %48 = vmatpush1.bf16.msra.mxu0 0
  %49 = vmatprep.subr.bf16.mxu0 0
  %50 = vmatpush1.bf16.msra.mxu0 0
  %51 = vmatprep.subr.bf16.mxu0 0
  %52 = vmatpush1.bf16.msra.mxu0 0
  %53 = vmatprep.subr.bf16.mxu0 0
  %54 = vmatpush1.bf16.msra.mxu0 0
  %55 = vmatprep.subr.bf16.mxu0 0
  %56 = vmatpush1.bf16.msra.mxu0 0
  %57 = vmatprep.subr.bf16.mxu0 0
  %58 = vmatpush1.bf16.msra.mxu0 0
  %59 = vmatprep.subr.bf16.mxu0 0
  %60 = vmatpush1.bf16.msra.mxu0 0
  %61 = vmatprep.subr.bf16.mxu0 0
  %62 = vmatpush1.bf16.msra.mxu0 0
  %63 = vmatprep.subr.bf16.mxu0 0
  %64 = vmatpush1.bf16.msra.mxu0 0
  %65 = vmatprep.subr.bf16.mxu0 0
  %66 = vmatpush1.bf16.msra.mxu0 0
  %67 = vmatprep.subr.bf16.mxu0 0
  %68 = vmatpush1.bf16.msra.mxu0 0
  %69 = vmatprep.subr.bf16.mxu0 0
  %70 = vmatpush1.bf16.msra.mxu0 0
  %71 = vmatprep.subr.bf16.mxu0 0
  %72 = vmatpush1.bf16.msra.mxu0 0
  %73 = vmatprep.mubr.bf16.mxu0 0
  %74 = vmatmul.mubr.bf16.gmra.mrb[0].mxu0 %v39
  %v75 = vpop.f32.mrb[0].mxu0
  %v76 = vadd.f32 0.0, %v75
  %v77 = vpop.f32.mrb[0].mxu0
  %v78 = vpop.f32.mrb[0].mxu0
  %v79 = vpop.f32.mrb[0].mxu0
  %80 = vdwg.mxu0
  %v81 = vmax.f32 %v76, 0.0
  %v82 = vpack.c.bf16 %v81, %v81
  %83 = vst [vmem:[%s2] sm:$0xf] %v82
  // Predicated region
  $region10: #{_forward.4} parent=0 // pred_check
    _
  $region11: #{_forward.4} parent=0 // pred_check_branch
    %85 = sbr.rel (0) target = $region13
  $region12: #{_forward.4} parent=0 // pred_region
    _
  $region13: #{_forward.4} parent=0 // pred_fallthru
    _
  // Predicated region
  $region14: #{_forward.4} parent=0 // pred_check
    _
  $region15: #{_forward.4} parent=0 // pred_check_branch
    %87 = sbr.rel (0) target = $region17
  $region16: #{_forward.4} parent=0 // pred_region
    _
  $region17: #{_forward.4} parent=0 // pred_fallthru
    _

// kernel: _forward.5
$region0: #{_forward.5}
  #allocation0 [shape = 'u32[]', space=smem, size = 0x4, offset = 0x4, fixed_abs, tag = 'smem constant byte address 0x4 - core index']
  #allocation1 [shape = 'u32[144,128]{1,0:T(1,128)}', space=vmem, size = 0x12000, scoped, tag = 'internal scratch']
  %s0 = inlined_call_operand.vmem [shape: bf16[80,128], index: 0, kind: input, shape index: {}]
  %s1 = inlined_call_operand.vmem [shape: bf16[8,80], index: 1, kind: input, shape index: {}]
  %s2 = inlined_call_operand.vmem [shape: f32[8,128], index: 2, kind: output, shape index: {}]
  %s3 = sld [smem:[#allocation0]]
  $region18: #{_forward.5} parent=0
    _
  %s5 = ssub.s32 1, %s3
  %s6 = scalar_select 0, %s5, %s3
  // Predicated region
  $region2: #{_forward.5} parent=0 // pred_check
    _
  $region3: #{_forward.5} parent=0 // pred_check_branch
    %8 = sbr.rel (0) target = $region5
  $region4: #{_forward.5} parent=0 // pred_region
    _
  $region5: #{_forward.5} parent=0 // pred_fallthru
    _
  // Predicated region
  $region6: #{_forward.5} parent=0 // pred_check
    _
  $region7: #{_forward.5} parent=0 // pred_check_branch
    %10 = sbr.rel (0) target = $region9
  $region8: #{_forward.5} parent=0 // pred_region
    _
  $region9: #{_forward.5} parent=0 // pred_fallthru
    _
  %v12 = vld [vmem:[%s1] sm:$0xf]
  %v13 = vld [vmem:[%s0] sm:$0xf]
  %v14 = vld [vmem:[%s0 + $0x4] sm:$0xf]
  %v15 = vld [vmem:[%s0 + $0x8] sm:$0xf]
  %v16 = vld [vmem:[%s0 + $0xc] sm:$0xf]
  %v17 = vld [vmem:[%s0 + $0x10] sm:$0xf]
  %v18 = vld [vmem:[%s0 + $0x14] sm:$0xf]
  %v19 = vld [vmem:[%s0 + $0x18] sm:$0xf]
  %v20 = vld [vmem:[%s0 + $0x1c] sm:$0xf]
  %v21 = vld [vmem:[%s0 + $0x20] sm:$0xf]
  %v22 = vld [vmem:[%s0 + $0x24] sm:$0xf]
  %v33 = vunpack.c.l.b16 %v13
  %v34 = vunpack.c.l.b16 %v14
  %v35 = vunpack.c.l.b16 %v15
  %v36 = vunpack.c.l.b16 %v16
  %v37 = vunpack.c.l.b16 %v17
  %v38 = vunpack.c.l.b16 %v18
  %v39 = vunpack.c.l.b16 %v19
  %v40 = vunpack.c.l.b16 %v20
  %v41 = vunpack.c.l.b16 %v21
  %v42 = vunpack.c.l.b16 %v22
  %v43 = vpack.c.b16 %v34, %v33
  %v44 = vpack.c.b16 %v36, %v35
  %v45 = vpack.c.b16 %v38, %v37
  %v46 = vpack.c.b16 %v40, %v39
  %v47 = vpack.c.b16 %v42, %v41
  %vm53 = vcmask 654336
  %v55 = vsel %vm53, %v12, 0
  %57 = vmatprep.subr.bf16.mxu0 0
  %58 = vmatpush1.bf16.msra.mxu0 %v43
  %59 = vmatprep.subr.bf16.mxu0 0
  %60 = vmatpush1.bf16.msra.mxu0 %v44
  %61 = vmatprep.subr.bf16.mxu0 0
  %62 = vmatpush1.bf16.msra.mxu0 %v45
  %63 = vmatprep.subr.bf16.mxu0 0
  %64 = vmatpush1.bf16.msra.mxu0 %v46
  %65 = vmatprep.subr.bf16.mxu0 0
  %66 = vmatpush1.bf16.msra.mxu0 %v47
  %67 = vmatprep.subr.bf16.mxu0 0
  %68 = vmatpush1.bf16.msra.mxu0 0
  %69 = vmatprep.subr.bf16.mxu0 0
  %70 = vmatpush1.bf16.msra.mxu0 0
  %71 = vmatprep.subr.bf16.mxu0 0
  %72 = vmatpush1.bf16.msra.mxu0 0
  %73 = vmatprep.subr.bf16.mxu0 0
  %74 = vmatpush1.bf16.msra.mxu0 0
  %75 = vmatprep.subr.bf16.mxu0 0
  %76 = vmatpush1.bf16.msra.mxu0 0
  %77 = vmatprep.subr.bf16.mxu0 0
  %78 = vmatpush1.bf16.msra.mxu0 0
  %79 = vmatprep.subr.bf16.mxu0 0
  %80 = vmatpush1.bf16.msra.mxu0 0
  %81 = vmatprep.subr.bf16.mxu0 0
  %82 = vmatpush1.bf16.msra.mxu0 0
  %83 = vmatprep.subr.bf16.mxu0 0
  %84 = vmatpush1.bf16.msra.mxu0 0
  %85 = vmatprep.subr.bf16.mxu0 0
  %86 = vmatpush1.bf16.msra.mxu0 0
  %87 = vmatprep.subr.bf16.mxu0 0
  %88 = vmatpush1.bf16.msra.mxu0 0
  %89 = vmatprep.mubr.bf16.mxu0 0
  %90 = vmatmul.mubr.bf16.gmra.mrb[0].mxu0 %v55
  %v91 = vpop.f32.mrb[0].mxu0
  %v92 = vadd.f32 0.0, %v91
  %v93 = vpop.f32.mrb[0].mxu0
  %v94 = vpop.f32.mrb[0].mxu0
  %v95 = vpop.f32.mrb[0].mxu0
  %96 = vdwg.mxu0
  %v97 = vmax.f32 %v92, 0.0
  %98 = vst [vmem:[%s2] sm:$0xff] %v97
  // Predicated region
  $region10: #{_forward.5} parent=0 // pred_check
    _
  $region11: #{_forward.5} parent=0 // pred_check_branch
    %100 = sbr.rel (0) target = $region13
  $region12: #{_forward.5} parent=0 // pred_region
    _
  $region13: #{_forward.5} parent=0 // pred_fallthru
    _
  // Predicated region
  $region14: #{_forward.5} parent=0 // pred_check
    _
  $region15: #{_forward.5} parent=0 // pred_check_branch
    %102 = sbr.rel (0) target = $region17
  $region16: #{_forward.5} parent=0 // pred_region
    _
  $region17: #{_forward.5} parent=0 // pred_fallthru
    _

</llo_original>
